<compile_context>
chip_gen: v7x
topology: tpu7x:2x2x1
jax: 0.10.0
libtpu: 0.0.40
codegen_flags: <defaults>
</compile_context>

<pallas_src>
import jax
import jax.numpy as jnp
from jax.experimental import pallas as pl
from jax.experimental.pallas import tpu as pltpu


def reward_mlp_kernel(sT_ref, aT_ref, w1sT_ref, w1aT_ref, b1_ref, w2_ref, b2_ref, o_ref):
    """One batch tile, batch-on-lanes: sT (S, TB), aT (1, TB) -> o (1, TB)."""
    s = sT_ref[...].astype(jnp.float32)            # (S, TB)  upcast in-kernel
    a = aT_ref[...].astype(jnp.float32)            # (1, TB)

    # Layer 1 with the concat fused in:
    #   W1.T @ [state | action].T == W1[:S].T @ s + W1[S].T * a
    h = jnp.dot(w1sT_ref[...], s, preferred_element_type=jnp.float32)   # (H, TB)  MXU
    h = h + w1aT_ref[...] * a + b1_ref[...]                             # VPU (lane bcast)
    h = jnp.maximum(h, 0.0)                                             # ReLU

    # Layer 2 (H -> 1): VPU multiply + sublane (H) reduce; scalar bias from SMEM.
    y = jnp.sum(h * w2_ref[...], axis=0, keepdims=True) + b2_ref[0, 0]  # (1, TB)

    # Lane-dense unmasked store of one reward row per grid step.
    o_ref[...] = y.astype(o_ref.dtype)


def reward_network_forward(state, action, params, *, tb=None):
    """Pallas forward matching RewardNetwork.forward.

    state : (B, 1, state_dim) or (B, state_dim)
    action: (B,)
    params: (w1 (input_dim, H), b1 (1, H), w2 (H, 1), b2 (1, 1)),
            input_dim == state_dim + 1.
    Returns (B, 1) float32 rewards.
    """
    w1, b1, w2, b2 = params
    B = state.shape[0]

    # Keep the batch dim (unlike torch .squeeze() for B == 1), then go
    # batch-on-lanes.  Input dtype is preserved through the DMA (bf16 friendly).
    # TODO(synk): in a fused pipeline the producer should emit (S, B) directly
    # so this wrapper transpose disappears.
    sT = state.reshape(B, -1).T                      # (S, B)
    aT = action.reshape(1, B)                        # (1, B)

    S = sT.shape[0]
    H = w1.shape[1]
    assert w1.shape[0] == S + 1, "w1 rows must be state_dim + 1 (state feats + action)"

    # Pre-transposed / column-shaped weights (f32, VMEM resident across the grid).
    w1sT = w1[:S, :].T.astype(jnp.float32)           # (H, S)
    w1aT = w1[S, :].reshape(H, 1).astype(jnp.float32)  # (H, 1)
    b1c = b1.reshape(H, 1).astype(jnp.float32)       # (H, 1)
    w2c = w2.reshape(H, 1).astype(jnp.float32)       # (H, 1)
    b2s = jnp.asarray(b2, jnp.float32).reshape(1, 1)  # scalar -> SMEM

    # Batch tile on the lane axis.  The kernel is grid-step-overhead bound, so
    # favour big tiles (sweep 2048-8192 for very large B); keep >= 2 blocks for
    # B > 128 so v7x's two TensorCores both get work.  The transposed layout
    # keeps even tb=4096 far below every generation's scoped-VMEM limit.
    if tb is None:
        if B <= 128:
            tb = B                                    # single block == full dim
        else:
            tb = min(4096, max(128, 128 * pl.cdiv(pl.cdiv(B, 2), 128)))
    nblk = pl.cdiv(B, tb)

    out = pl.pallas_call(
        reward_mlp_kernel,
        out_shape=jax.ShapeDtypeStruct((1, B), jnp.float32),
        grid=(nblk,),
        in_specs=[
            pl.BlockSpec((S, tb), lambda i: (0, i)),            # state tile (streamed)
            pl.BlockSpec((1, tb), lambda i: (0, i)),            # action row (lane-dense)
            pl.BlockSpec((H, S), lambda i: (0, 0)),             # W1[:S].T  (VMEM resident)
            pl.BlockSpec((H, 1), lambda i: (0, 0)),             # W1[S].T   (VMEM resident)
            pl.BlockSpec((H, 1), lambda i: (0, 0)),             # b1        (VMEM resident)
            pl.BlockSpec((H, 1), lambda i: (0, 0)),             # w2 column (VMEM resident)
            pl.BlockSpec(memory_space=pltpu.MemorySpace.SMEM),  # b2 scalar in SMEM
        ],
        out_specs=pl.BlockSpec((1, tb), lambda i: (0, i)),      # lane-dense reward row
        compiler_params=pltpu.CompilerParams(
            dimension_semantics=("parallel",),                  # v7x: 2 TCs split batch
        ),
    )(sT, aT, w1sT, w1aT, b1c, w2c, b2s)

    return out.reshape(B, 1)                                    # (1, B) -> (B, 1), no copy


def init_params(key, input_dim, hidden_dim=64):
    k1, k2, k3, k4 = jax.random.split(key, 4)
    # Deterministic synthetic init (uniform, PyTorch-Linear-style bounds).
    bound1 = 1.0 / jnp.sqrt(input_dim)
    bound2 = 1.0 / jnp.sqrt(hidden_dim)
    w1 = jax.random.uniform(k1, (input_dim, hidden_dim), jnp.float32, -bound1, bound1)
    b1 = jax.random.uniform(k2, (1, hidden_dim), jnp.float32, -bound1, bound1)
    w2 = jax.random.uniform(k3, (hidden_dim, 1), jnp.float32, -bound2, bound2)
    b2 = jax.random.uniform(k4, (1, 1), jnp.float32, -bound2, bound2)
    return (w1, b1, w2, b2)


def _reference(state, action, params):
    w1, b1, w2, b2 = params
    B = state.shape[0]
    x = jnp.concatenate([state.reshape(B, -1), action[:, None]], axis=1)
    return jnp.maximum(x @ w1 + b1, 0.0) @ w2 + b2


if __name__ == "__main__":
    key = jax.random.PRNGKey(0)
    k_state, k_action, k_params = jax.random.split(key, 3)

    B = 8
    state_dim = 15
    input_dim = state_dim + 1          # state features + 1 action feature
    hidden_dim = 32

    state = jax.random.normal(k_state, (B, 1, state_dim), jnp.float32)
    action = jax.random.normal(k_action, (B,), jnp.float32)
    params = init_params(k_params, input_dim, hidden_dim)

    out = jax.block_until_ready(reward_network_forward(state, action, params))
    ref = _reference(state, action, params)
    assert out.shape == (B, 1)
    assert jnp.allclose(out, ref, atol=1e-5, rtol=1e-4)

    # Multi-block grid (nblk > 1) + ragged last block (no jnp.pad), default tb.
    B2 = 300
    state2 = jax.random.normal(k_state, (B2, 1, state_dim), jnp.float32)
    action2 = jax.random.normal(k_action, (B2,), jnp.float32)
    out2 = jax.block_until_ready(reward_network_forward(state2, action2, params))
    ref2 = _reference(state2, action2, params)
    assert out2.shape == (B2, 1)
    assert jnp.allclose(out2, ref2, atol=1e-5, rtol=1e-4)

    # Same ragged batch with an explicit small tile (nblk = 3, tail = 44 rows).
    out3 = jax.block_until_ready(
        reward_network_forward(state2, action2, params, tb=128))
    assert jnp.allclose(out3, ref2, atol=1e-5, rtol=1e-4)

    print("KERNEL_OK")
</pallas_src>

<mosaic_0001>
module attributes {stable_mosaic.version = 11 : i64} {
  func.func @reward_mlp_kernel(%arg0: i32, %arg1: memref<15x8xf32, #tpu.memory_space<vmem>>, %arg2: memref<1x8xf32, #tpu.memory_space<vmem>>, %arg3: memref<32x15xf32, #tpu.memory_space<vmem>>, %arg4: memref<32x1xf32, #tpu.memory_space<vmem>>, %arg5: memref<32x1xf32, #tpu.memory_space<vmem>>, %arg6: memref<32x1xf32, #tpu.memory_space<vmem>>, %arg7: memref<1x1xf32, #tpu.memory_space<smem>>, %arg8: memref<1x8xf32, #tpu.memory_space<vmem>>) attributes {dimension_semantics = [#tpu.dimension_semantics<parallel>], iteration_bounds = array<i64: 1>, scalar_prefetch = 0 : i64, scratch_operands = 0 : i64, tpu.core_type = #tpu.core_type<tc>, window_params = [{transform_indices = @transform_0, window_bounds = array<i64: 15, 8>}, {transform_indices = @transform_1, window_bounds = array<i64: 1, 8>}, {pipeline_mode = #tpu.pipeline_mode<synchronous>, transform_indices = @transform_2, window_bounds = array<i64: 32, 15>}, {pipeline_mode = #tpu.pipeline_mode<synchronous>, transform_indices = @transform_3, window_bounds = array<i64: 32, 1>}, {pipeline_mode = #tpu.pipeline_mode<synchronous>, transform_indices = @transform_4, window_bounds = array<i64: 32, 1>}, {pipeline_mode = #tpu.pipeline_mode<synchronous>, transform_indices = @transform_5, window_bounds = array<i64: 32, 1>}, {transform_indices = @transform_6, window_bounds = array<i64: 1, 1>}, {transform_indices = @transform_7, window_bounds = array<i64: 1, 8>}]} {
    %c0 = arith.constant 0 : index
    %c0_0 = arith.constant 0 : index
    %0 = vector.load %arg1[%c0, %c0_0] : memref<15x8xf32, #tpu.memory_space<vmem>>, vector<15x8xf32>
    %c0_1 = arith.constant 0 : index
    %c0_2 = arith.constant 0 : index
    %1 = vector.load %arg2[%c0_1, %c0_2] : memref<1x8xf32, #tpu.memory_space<vmem>>, vector<1x8xf32>
    %c0_3 = arith.constant 0 : index
    %c0_4 = arith.constant 0 : index
    %2 = vector.load %arg3[%c0_3, %c0_4] : memref<32x15xf32, #tpu.memory_space<vmem>>, vector<32x15xf32>
    %cst = arith.constant dense<0.000000e+00> : vector<32x8xf32>
    %3 = tpu.matmul %2, %0, %cst {dimension_numbers = #tpu.dot_dimension_numbers<[1], [0], [0], [1], [0, 0, 1, 1], [], []>} : vector<32x15xf32>, vector<15x8xf32>, vector<32x8xf32> -> vector<32x8xf32>
    %c0_5 = arith.constant 0 : index
    %c0_6 = arith.constant 0 : index
    %4 = vector.load %arg4[%c0_5, %c0_6] : memref<32x1xf32, #tpu.memory_space<vmem>>, vector<32x1xf32>
    %5 = vector.broadcast %4 : vector<32x1xf32> to vector<32x8xf32>
    %6 = vector.broadcast %1 : vector<1x8xf32> to vector<32x8xf32>
    %7 = arith.mulf %5, %6 : vector<32x8xf32>
    %8 = arith.addf %3, %7 : vector<32x8xf32>
    %c0_7 = arith.constant 0 : index
    %c0_8 = arith.constant 0 : index
    %9 = vector.load %arg5[%c0_7, %c0_8] : memref<32x1xf32, #tpu.memory_space<vmem>>, vector<32x1xf32>
    %10 = vector.broadcast %9 : vector<32x1xf32> to vector<32x8xf32>
    %11 = arith.addf %8, %10 : vector<32x8xf32>
    %cst_9 = arith.constant 0.000000e+00 : f32
    %12 = vector.broadcast %cst_9 : f32 to vector<32x8xf32>
    %13 = arith.maximumf %11, %12 : vector<32x8xf32>
    %c0_10 = arith.constant 0 : index
    %c0_11 = arith.constant 0 : index
    %14 = vector.load %arg6[%c0_10, %c0_11] : memref<32x1xf32, #tpu.memory_space<vmem>>, vector<32x1xf32>
    %15 = vector.broadcast %14 : vector<32x1xf32> to vector<32x8xf32>
    %16 = arith.mulf %13, %15 : vector<32x8xf32>
    %cst_12 = arith.constant dense<0.000000e+00> : vector<8xf32>
    %17 = vector.multi_reduction <add>, %16, %cst_12 [0] : vector<32x8xf32> to vector<8xf32>
    %18 = vector.shape_cast %17 : vector<8xf32> to vector<1x8xf32>
    %c0_13 = arith.constant 0 : index
    %c0_14 = arith.constant 0 : index
    %19 = memref.load %arg7[%c0_13, %c0_14] : memref<1x1xf32, #tpu.memory_space<smem>>
    %20 = vector.broadcast %19 : f32 to vector<1x8xf32>
    %21 = arith.addf %18, %20 : vector<1x8xf32>
    %c0_15 = arith.constant 0 : index
    %c0_16 = arith.constant 0 : index
    %22 = vector.load %arg8[%c0_15, %c0_16] : memref<1x8xf32, #tpu.memory_space<vmem>>, vector<1x8xf32>
    tpu.vector_store %arg8[%c0_15, %c0_16], %21 {strides = array<i32>} : memref<1x8xf32, #tpu.memory_space<vmem>>, vector<1x8xf32>,
    return
  }
  func.func @transform_0(%arg0: i32) -> (i32, i32) {
    %c0_i32 = arith.constant 0 : i32
    %c0_i32_0 = arith.constant 0 : i32
    return %c0_i32, %arg0 : i32, i32
  }
  func.func @transform_1(%arg0: i32) -> (i32, i32) {
    %c0_i32 = arith.constant 0 : i32
    %c0_i32_0 = arith.constant 0 : i32
    return %c0_i32, %arg0 : i32, i32
  }
  func.func @transform_2(%arg0: i32) -> (i32, i32) {
    %c0_i32 = arith.constant 0 : i32
    %c0_i32_0 = arith.constant 0 : i32
    %c0_i32_1 = arith.constant 0 : i32
    return %c0_i32, %c0_i32_0 : i32, i32
  }
  func.func @transform_3(%arg0: i32) -> (i32, i32) {
    %c0_i32 = arith.constant 0 : i32
    %c0_i32_0 = arith.constant 0 : i32
    %c0_i32_1 = arith.constant 0 : i32
    return %c0_i32, %c0_i32_0 : i32, i32
  }
  func.func @transform_4(%arg0: i32) -> (i32, i32) {
    %c0_i32 = arith.constant 0 : i32
    %c0_i32_0 = arith.constant 0 : i32
    %c0_i32_1 = arith.constant 0 : i32
    return %c0_i32, %c0_i32_0 : i32, i32
  }
  func.func @transform_5(%arg0: i32) -> (i32, i32) {
    %c0_i32 = arith.constant 0 : i32
    %c0_i32_0 = arith.constant 0 : i32
    %c0_i32_1 = arith.constant 0 : i32
    return %c0_i32, %c0_i32_0 : i32, i32
  }
  func.func @transform_6(%arg0: i32) -> (i32, i32) {
    %c0_i32 = arith.constant 0 : i32
    %c0_i32_0 = arith.constant 0 : i32
    %c0_i32_1 = arith.constant 0 : i32
    return %c0_i32, %c0_i32_0 : i32, i32
  }
  func.func @transform_7(%arg0: i32) -> (i32, i32) {
    %c0_i32 = arith.constant 0 : i32
    %c0_i32_0 = arith.constant 0 : i32
    return %c0_i32, %arg0 : i32, i32
  }
}

</mosaic_0001>

<llo_original>
// kernel: tpu_custom_call.1
$region0: #{tpu_custom_call.1}
  #allocation0 [shape = 'u32[]', space=smem, size = 0x4, offset = 0x4, fixed_abs, tag = 'smem constant byte address 0x4 - core index']
  #allocation1 [shape = 'u32[144,128]{1,0:T(1,128)}', space=vmem, size = 0x12000, scoped, tag = 'internal scratch']
  #allocation2 [shape = 'f32[1,1]{1,0:T(1,128)S(6)}', space=smem, size = 0x200, scoped, tag = 'scoped memory for tpu_custom_call.1']
  %s0 = inlined_call_operand.vmem [shape: f32[15,8], index: 0, kind: input, shape index: {}]
  %s1 = inlined_call_operand.vmem [shape: f32[1,8], index: 1, kind: input, shape index: {}]
  %s2 = inlined_call_operand.vmem [shape: f32[32,15], index: 2, kind: input, shape index: {}]
  %s3 = inlined_call_operand.vmem [shape: f32[32,1], index: 3, kind: input, shape index: {}]
  %s4 = inlined_call_operand.vmem [shape: f32[32,1], index: 4, kind: input, shape index: {}]
  %s5 = inlined_call_operand.vmem [shape: f32[32,1], index: 5, kind: input, shape index: {}]
  %s6 = inlined_call_operand.<no memory space> [shape: f32[1,1], index: 6, kind: input, shape index: {}]
  %s7 = inlined_call_operand.hbm [shape: f32[1,8], index: 7, kind: output, shape index: {}]
  %s8 = sld [smem:[#allocation0]]
  $region38: #{tpu_custom_call.1} parent=0
    _
  %s10 = ssub.s32 1, %s8
  %s11 = scalar_select 0, %s10, %s8
  %12 = sst [smem:[#allocation2]] %s6
  $region1: #{tpu_custom_call.1} parent=0
    #allocation3 [shape = 'u8[512]{0}', space=vmem, size = 0x400, scoped, tag = 'output window, operand 0, single buffered']
    #allocation4 [shape = 's32[1]{0}', space=sflag, size = 0x4, scoped, tag = 'scoped memory for tpu_custom_call.1']
    %13 = vsyncpa [#allocation4], 0
    // Predicated region
    $region2: #{tpu_custom_call.1} parent=1 // pred_check
      _
    $region3: #{tpu_custom_call.1} parent=1 // pred_check_branch
      %15 = sbr.rel (0) target = $region5
    $region4: #{tpu_custom_call.1} parent=1 // pred_region
      _
    $region5: #{tpu_custom_call.1} parent=1 // pred_fallthru
      _
    // Predicated region
    $region6: #{tpu_custom_call.1} parent=1 // pred_check
      _
    $region7: #{tpu_custom_call.1} parent=1 // pred_check_branch
      %17 = sbr.rel (0) target = $region9
    $region8: #{tpu_custom_call.1} parent=1 // pred_region
      _
    $region9: #{tpu_custom_call.1} parent=1 // pred_fallthru
      _
    // Predicated region
    $region10: #{tpu_custom_call.1} parent=1 // pred_check
      _
    $region11: #{tpu_custom_call.1} parent=1 // pred_check_branch
      %19 = sbr.rel (0) target = $region13
    $region12: #{tpu_custom_call.1} parent=1 // pred_region
      _
    $region13: #{tpu_custom_call.1} parent=1 // pred_fallthru
      _
    // Predicated region
    $region14: #{tpu_custom_call.1} parent=1 // pred_check
      _
    $region15: #{tpu_custom_call.1} parent=1 // pred_check_branch
      %21 = sbr.rel (0) target = $region17
    $region16: #{tpu_custom_call.1} parent=1 // pred_region
      _
    $region17: #{tpu_custom_call.1} parent=1 // pred_fallthru
      _
    // Predicated region
    $region18: #{tpu_custom_call.1} parent=1 // pred_check
      _
    $region19: #{tpu_custom_call.1} parent=1 // pred_check_branch
      %23 = sbr.rel (0) target = $region21
    $region20: #{tpu_custom_call.1} parent=1 // pred_region
      _
    $region21: #{tpu_custom_call.1} parent=1 // pred_fallthru
      _
    // Predicated region
    $region22: #{tpu_custom_call.1} parent=1 // pred_check
      _
    $region23: #{tpu_custom_call.1} parent=1 // pred_check_branch
      %25 = sbr.rel (0) target = $region25
    $region24: #{tpu_custom_call.1} parent=1 // pred_region
      _
    $region25: #{tpu_custom_call.1} parent=1 // pred_fallthru
      _
    // Predicated region
    $region26: #{tpu_custom_call.1} parent=1 // pred_check
      _
    $region27: #{tpu_custom_call.1} parent=1 // pred_check_branch
      %27 = sbr.rel (0) target = $region29
    $region28: #{tpu_custom_call.1} parent=1 // pred_region
      _
    $region29: #{tpu_custom_call.1} parent=1 // pred_fallthru
      _
    %v28 = vld [vmem:[%s0] sm:$0xff]
    %v29 = vld [vmem:[%s0 + $0x8] sm:$0x7f]
    %v30 = vld [vmem:[%s1] sm:$0x1]
    %v31 = vld [vmem:[%s2] sm:$0xff]
    %v32 = vld [vmem:[%s2 + $0x8] sm:$0xff]
    %v33 = vld [vmem:[%s2 + $0x10] sm:$0xff]
    %v34 = vld [vmem:[%s2 + $0x18] sm:$0xff]
    %v35 = vld [vmem:[%s3] sm:$0xff]
    %v36 = vld [vmem:[%s3 + $0x8] sm:$0xff]
    %v37 = vld [vmem:[%s3 + $0x10] sm:$0xff]
    %v38 = vld [vmem:[%s3 + $0x18] sm:$0xff]
    %40 = vset.pattern.permute.xlu0 0
    %41 = vperm.xlu0 %40, %v35
    %v42 = vpop.permute.xlu0 %41
    %45 = vset.pattern.permute.xlu0 0
    %46 = vperm.xlu0 %45, %v36
    %v47 = vpop.permute.xlu0 %46
    %50 = vset.pattern.permute.xlu0 0
    %51 = vperm.xlu0 %50, %v37
    %v52 = vpop.permute.xlu0 %51
    %55 = vset.pattern.permute.xlu0 0
    %56 = vperm.xlu0 %55, %v38
    %v57 = vpop.permute.xlu0 %56
    %v60 = vlaneseq
    %v61 = vshrl.u32 %v60, 7
    %v62 = vsub.s32 0, %v61
    %v63 = vrot.slane %v30, %v62
    %v65 = vmul.f32 %v42, %v63
    %v66 = vmul.f32 %v47, %v63
    %v67 = vmul.f32 %v52, %v63
    %v68 = vmul.f32 %v57, %v63
    %vm69 = vcmask 121856
    %v71 = vsel %vm69, %v31, 0
    %v74 = vsel %vm69, %v32, 0
    %v77 = vsel %vm69, %v33, 0
    %v80 = vsel %vm69, %v34, 0
    %vm82 = vcmask 1046528
    %v84 = vsel %vm82, %v29, 0
    %86 = vmatprep.subr.mxu0 0.0
    %87 = vmatpush1.msra.mxu0 %v28
    %88 = vmatprep.subr.mxu0 0.0
    %89 = vmatpush1.msra.mxu0 %v84
    %90 = vmatprep.subr.mxu0 0.0
    %91 = vmatpush1.msra.mxu0 0.0
    %92 = vmatprep.subr.mxu0 0.0
    %93 = vmatpush1.msra.mxu0 0.0
    %94 = vmatprep.subr.mxu0 0.0
    %95 = vmatpush1.msra.mxu0 0.0
    %96 = vmatprep.subr.mxu0 0.0
    %97 = vmatpush1.msra.mxu0 0.0
    %98 = vmatprep.subr.mxu0 0.0
    %99 = vmatpush1.msra.mxu0 0.0
    %100 = vmatprep.subr.mxu0 0.0
    %101 = vmatpush1.msra.mxu0 0.0
    %102 = vmatprep.subr.mxu0 0.0
    %103 = vmatpush1.msra.mxu0 0.0
    %104 = vmatprep.subr.mxu0 0.0
    %105 = vmatpush1.msra.mxu0 0.0
    %106 = vmatprep.subr.mxu0 0.0
    %107 = vmatpush1.msra.mxu0 0.0
    %108 = vmatprep.subr.mxu0 0.0
    %109 = vmatpush1.msra.mxu0 0.0
    %110 = vmatprep.subr.mxu0 0.0
    %111 = vmatpush1.msra.mxu0 0.0
    %112 = vmatprep.subr.mxu0 0.0
    %113 = vmatpush1.msra.mxu0 0.0
    %114 = vmatprep.subr.mxu0 0.0
    %115 = vmatpush1.msra.mxu0 0.0
    %116 = vmatprep.subr.mxu0 0.0
    %117 = vmatpush1.msra.mxu0 0.0
    %118 = vmatprep.subr.mxu0 0.0
    %119 = vmatpush1.msra.mxu0 0.0
    %120 = vmatprep.subr.mxu0 0.0
    %121 = vmatpush1.msra.mxu0 0.0
    %122 = vmatprep.subr.mxu0 0.0
    %123 = vmatpush1.msra.mxu0 0.0
    %124 = vmatprep.subr.mxu0 0.0
    %125 = vmatpush1.msra.mxu0 0.0
    %126 = vmatprep.subr.mxu0 0.0
    %127 = vmatpush1.msra.mxu0 0.0
    %128 = vmatprep.subr.mxu0 0.0
    %129 = vmatpush1.msra.mxu0 0.0
    %130 = vmatprep.subr.mxu0 0.0
    %131 = vmatpush1.msra.mxu0 0.0
    %132 = vmatprep.subr.mxu0 0.0
    %133 = vmatpush1.msra.mxu0 0.0
    %134 = vmatprep.subr.mxu0 0.0
    %135 = vmatpush1.msra.mxu0 0.0
    %136 = vmatprep.subr.mxu0 0.0
    %137 = vmatpush1.msra.mxu0 0.0
    %138 = vmatprep.subr.mxu0 0.0
    %139 = vmatpush1.msra.mxu0 0.0
    %140 = vmatprep.subr.mxu0 0.0
    %141 = vmatpush1.msra.mxu0 0.0
    %142 = vmatprep.subr.mxu0 0.0
    %143 = vmatpush1.msra.mxu0 0.0
    %144 = vmatprep.subr.mxu0 0.0
    %145 = vmatpush1.msra.mxu0 0.0
    %146 = vmatprep.subr.mxu0 0.0
    %147 = vmatpush1.msra.mxu0 0.0
    %148 = vmatprep.subr.mxu0 0.0
    %149 = vmatpush1.msra.mxu0 0.0
    %150 = vmatprep.mubr.f32.mxu0 0.0
    %151 = vmatmul.mubr.f32.gmra.mrb[0].mxu0 %v71
    %v152 = vpop.f32.mrb[0].mxu0
    %v153 = vadd.f32 %v65, %v152
    %v154 = vpop.f32.mrb[0].mxu0
    %155 = vmatprep.mubr.f32.mxu0 0.0
    %156 = vmatmul.mubr.f32.gmra.mrb[0].mxu0 %v74
    %v157 = vpop.f32.mrb[0].mxu0
    %v158 = vadd.f32 %v66, %v157
    %v159 = vpop.f32.mrb[0].mxu0
    %160 = vmatprep.mubr.f32.mxu0 0.0
    %161 = vmatmul.mubr.f32.gmra.mrb[0].mxu0 %v77
    %v162 = vpop.f32.mrb[0].mxu0
    %v163 = vadd.f32 %v67, %v162
    %v164 = vpop.f32.mrb[0].mxu0
    %165 = vmatprep.mubr.f32.mxu0 0.0
    %166 = vmatmul.mubr.f32.gmra.mrb[0].mxu0 %v80
    %v167 = vpop.f32.mrb[0].mxu0
    %v168 = vadd.f32 %v68, %v167
    %v169 = vpop.f32.mrb[0].mxu0
    %170 = vdwg.mxu0
    %v171 = vld [vmem:[%s4] sm:$0xff]
    %v172 = vld [vmem:[%s4 + $0x8] sm:$0xff]
    %v173 = vld [vmem:[%s4 + $0x10] sm:$0xff]
    %v174 = vld [vmem:[%s4 + $0x18] sm:$0xff]
    %176 = vset.pattern.permute.xlu0 0
    %177 = vperm.xlu0 %176, %v171
    %v178 = vpop.permute.xlu0 %177
    %181 = vset.pattern.permute.xlu0 0
    %182 = vperm.xlu0 %181, %v172
    %v183 = vpop.permute.xlu0 %182
    %186 = vset.pattern.permute.xlu0 0
    %187 = vperm.xlu0 %186, %v173
    %v188 = vpop.permute.xlu0 %187
    %191 = vset.pattern.permute.xlu0 0
    %192 = vperm.xlu0 %191, %v174
    %v193 = vpop.permute.xlu0 %192
    %v195 = vadd.f32 %v153, %v178
    %v196 = vadd.f32 %v158, %v183
    %v197 = vadd.f32 %v163, %v188
    %v198 = vadd.f32 %v168, %v193
    %v199 = vmax.f32 %v195, 0.0
    %v200 = vmax.f32 %v196, 0.0
    %v201 = vmax.f32 %v197, 0.0
    %v202 = vmax.f32 %v198, 0.0
    %v203 = vld [vmem:[%s5] sm:$0xff]
    %v204 = vld [vmem:[%s5 + $0x8] sm:$0xff]
    %v205 = vld [vmem:[%s5 + $0x10] sm:$0xff]
    %v206 = vld [vmem:[%s5 + $0x18] sm:$0xff]
    %208 = vset.pattern.permute.xlu0 0
    %209 = vperm.xlu0 %208, %v203
    %v210 = vpop.permute.xlu0 %209
    %213 = vset.pattern.permute.xlu0 0
    %214 = vperm.xlu0 %213, %v204
    %v215 = vpop.permute.xlu0 %214
    %218 = vset.pattern.permute.xlu0 0
    %219 = vperm.xlu0 %218, %v205
    %v220 = vpop.permute.xlu0 %219
    %223 = vset.pattern.permute.xlu0 0
    %224 = vperm.xlu0 %223, %v206
    %v225 = vpop.permute.xlu0 %224
    %v227 = vmul.f32 %v199, %v210
    %v228 = vmul.f32 %v200, %v215
    %v229 = vmul.f32 %v201, %v220
    %v230 = vmul.f32 %v202, %v225
    %vm231 = vcmask 64512
    %v232 = vsel %vm231, %v227, 0.0
    %v233 = vsel %vm231, %v228, 0.0
    %v234 = vadd.f32 %v232, %v233
    %v235 = vsel %vm231, %v229, 0.0
    %v236 = vadd.f32 %v234, %v235
    %v237 = vsel %vm231, %v230, 0.0
    %v238 = vadd.f32 %v236, %v237
    %v239 = vrot.slane %v238, 4
    %v240 = vadd.f32 %v238, %v239
    %v241 = vrot.slane %v240, 2
    %v242 = vadd.f32 %v240, %v241
    %v243 = vrot.slane %v242, 1
    %v244 = vadd.f32 %v242, %v243
    %s245 = sld [smem:[#allocation2]]
    %v246 = vstv %s245
    %v247 = vadd.f32 %v244, %v246
    %vm248 = vcmask 57344
    %249 = vst.msk [vmem:[#allocation3] sm:$0x1] %vm248, %v247
    // Predicated region
    $region30: #{tpu_custom_call.1} parent=1 // pred_check
      _
    $region31: #{tpu_custom_call.1} parent=1 // pred_check_branch
      %251 = sbr.rel (0) target = $region33
    $region32: #{tpu_custom_call.1} parent=1 // pred_region
      %s253 = ssub.s32 16, 16
      %254 = vsyncadd [#allocation4], %s253
      %s256 = sshll.u32 [#allocation3], 4
      %s257 = int_to_ptr.vmem [resolvable:$true] %s256
      %259 = dma.vmem_to_hbm [thread:$0]  %s257, 16, %s7, [#allocation4]
    $region33: #{tpu_custom_call.1} parent=1 // pred_fallthru
      _
    // Predicated region
    $region34: #{tpu_custom_call.1} parent=1 // pred_check
      _
    $region35: #{tpu_custom_call.1} parent=1 // pred_check_branch
      %261 = sbr.rel (0) target = $region37
    $region36: #{tpu_custom_call.1} parent=1 // pred_region
      %262 = dma.done [#allocation4], 16
    $region37: #{tpu_custom_call.1} parent=1 // pred_fallthru
      _
    %263 = vsyncpa [#allocation4], 1

</llo_original>
